<compile_context>
chip_gen: v6e
topology: v6e:2x2x1
jax: 0.10.0
libtpu: 0.0.40
codegen_flags: <defaults>
</compile_context>

<pallas_src>
import jax
import jax.numpy as jnp
import numpy as np
from jax.experimental import pallas as pl
from jax.experimental.pallas import tpu as pltpu

LANE = 128          # TPU lane width
SUB = 8             # TPU sublane count
S_TILE_MAX = 1024   # 1024 x 128 = 131072 angles / grid step (~5.75 MiB block)


def _round_up(x: int, m: int) -> int:
    return ((x + m - 1) // m) * m


def _harmonic_angle_kernel(data_ref, out_ref):
    # data_ref: (11, S_TILE, 128) f32, rows = xi,yi,zi,xj,yj,zj,xk,yk,zk,th0,k
    # out_ref : (8, 128) f32 per-tile partial energy sums
    xi, yi, zi = data_ref[0], data_ref[1], data_ref[2]
    xj, yj, zj = data_ref[3], data_ref[4], data_ref[5]
    xk, yk, zk = data_ref[6], data_ref[7], data_ref[8]
    th0 = data_ref[9]
    kf = data_ref[10]

    # Bond vectors j->i and j->k.
    ax, ay, az = xi - xj, yi - yj, zi - zj
    bx, by, bz = xk - xj, yk - yj, zk - zj

    dot = ax * bx + ay * by + az * bz
    cx = ay * bz - az * by
    cy = az * bx - ax * bz
    cz = ax * by - ay * bx
    cross = jnp.sqrt(cx * cx + cy * cy + cz * cz)

    theta = jnp.arctan2(cross, dot)            # angle in [0, pi]
    dth = theta - th0
    e = 0.5 * kf * dth * dth                   # (S_TILE, 128)

    # Reduce sublane-groups into an (8, 128) partial: pure VPU adds over the
    # major axis (free re-view of the (8,128)-tiled layout), no XLU per lane.
    s_tile = e.shape[0]
    out_ref[...] = jnp.sum(e.reshape(s_tile // SUB, SUB, LANE), axis=0)


def compute_harmonic_angle_energy(coords, angles, th0, k):
    """coords: (N,3) f32, angles: (A,3) i32, th0: (A,) f32, k: (A,) f32 -> scalar f32."""
    num_angles = angles.shape[0]

    # Static tiling: sublane rows needed (ceil), rounded to multiples of 8.
    s_rows = max(1, -(-num_angles // LANE))
    if s_rows >= 2 * SUB:
        # Split into >= 2 tiles so the "parallel" grid axis can shard across
        # both v7x TensorCores on medium problem sizes.
        s_tile = min(S_TILE_MAX, _round_up(-(-s_rows // 2), SUB))
    else:
        s_tile = SUB
    num_tiles = -(-s_rows // s_tile)
    s_total = num_tiles * s_tile
    a_pad = s_total * LANE

    # Three contiguous row-gathers of coords (12 B rows) instead of nine
    # per-column gathers; the column slices below fuse into the pack fusion.
    ci = coords[angles[:, 0]].astype(jnp.float32)   # (A, 3)
    cj = coords[angles[:, 1]].astype(jnp.float32)
    ck = coords[angles[:, 2]].astype(jnp.float32)
    packed = jnp.stack(
        [ci[:, 0], ci[:, 1], ci[:, 2],
         cj[:, 0], cj[:, 1], cj[:, 2],
         ck[:, 0], ck[:, 1], ck[:, 2],
         th0.astype(jnp.float32), k.astype(jnp.float32)],
        axis=0,
    )                                                # (11, A)
    packed = jnp.pad(packed, ((0, 0), (0, a_pad - num_angles)))
    data = packed.reshape(11, s_total, LANE)         # (11, S_total, 128)
    # TODO(synk): for very large A on bandwidth-bound v5e/v6e, move the coords
    # gather inside the kernel (coords resident in VMEM + per-tile int32 index
    # blocks) to eliminate the packed-array HBM round trip entirely.

    cost = pl.CostEstimate(
        flops=50 * a_pad,
        transcendentals=2 * a_pad,
        bytes_accessed=4 * 11 * a_pad + 4 * num_tiles * SUB * LANE,
    )

    partials = pl.pallas_call(
        _harmonic_angle_kernel,
        out_shape=jax.ShapeDtypeStruct((num_tiles * SUB, LANE), jnp.float32),
        grid=(num_tiles,),
        in_specs=[pl.BlockSpec((11, s_tile, LANE), lambda i: (0, i, 0))],
        out_specs=pl.BlockSpec((SUB, LANE), lambda i: (i, 0)),
        compiler_params=pltpu.CompilerParams(
            dimension_semantics=("parallel",)),
        cost_estimate=cost,
    )(data)

    # Tiny final reduction over per-tile partials (num_tiles*8, 128).
    return jnp.sum(partials)


class HarmonicAngleForce:
    """JAX/Pallas analogue of HarmonicAngleTorchForce (parameters built in-script)."""

    def __init__(self, angles, th0, k):
        self.angles = jnp.asarray(angles, dtype=jnp.int32)
        self.th0 = jnp.asarray(th0, dtype=jnp.float32)
        self.k = jnp.asarray(k, dtype=jnp.float32)

    def __call__(self, coords, box):
        del box  # unused: no PBC / minimum-image wrapping in this energy term
        return compute_harmonic_angle_energy(coords, self.angles, self.th0, self.k)


if __name__ == "__main__":
    key = jax.random.PRNGKey(0)
    k_coords, k_th0, k_k = jax.random.split(key, 3)

    n_atoms = 16
    n_angles = 10

    coords = jax.random.normal(k_coords, (n_atoms, 3), dtype=jnp.float32) * 0.5

    # Deterministic angle triplets (i, j, k) along an atom chain.
    idx = np.arange(n_angles)
    angles = np.stack([idx, idx + 1, idx + 2], axis=1).astype(np.int32)

    th0 = jax.random.uniform(k_th0, (n_angles,), minval=0.5, maxval=2.5,
                             dtype=jnp.float32)
    kparam = jax.random.uniform(k_k, (n_angles,), minval=50.0, maxval=500.0,
                                dtype=jnp.float32)

    force = HarmonicAngleForce(angles, th0, kparam)
    box = jnp.eye(3, dtype=jnp.float32) * 3.0  # accepted but unused

    energy = force(coords, box)
    energy = jax.block_until_ready(energy)

    # Pure-numpy reference check.
    c = np.asarray(coords, dtype=np.float64)
    a = np.asarray(angles)
    rij = c[a[:, 0]] - c[a[:, 1]]
    rkj = c[a[:, 2]] - c[a[:, 1]]
    dot = np.sum(rij * rkj, axis=-1)
    cross = np.linalg.norm(np.cross(rij, rkj), axis=-1)
    theta = np.arctan2(cross, dot)
    e_ref = np.sum(0.5 * np.asarray(kparam, np.float64)
                   * (theta - np.asarray(th0, np.float64)) ** 2)

    assert np.allclose(float(energy), e_ref, rtol=1e-2, atol=1e-2), (float(energy), e_ref)
    print("KERNEL_OK")
</pallas_src>

<mosaic_0001>
module attributes {stable_mosaic.version = 11 : i64} {
  func.func @_harmonic_angle_kernel(%arg0: i32, %arg1: memref<11x8x128xf32, #tpu.memory_space<vmem>>, %arg2: memref<8x128xf32, #tpu.memory_space<vmem>>) attributes {dimension_semantics = [#tpu.dimension_semantics<parallel>], iteration_bounds = array<i64: 1>, scalar_prefetch = 0 : i64, scratch_operands = 0 : i64, tpu.core_type = #tpu.core_type<tc>, window_params = [{transform_indices = @transform_0, window_bounds = array<i64: 11, 8, 128>}, {transform_indices = @transform_1, window_bounds = array<i64: 8, 128>}]} {
    %c0 = arith.constant 0 : index
    %c0_0 = arith.constant 0 : index
    %c0_1 = arith.constant 0 : index
    %0 = vector.load %arg1[%c0, %c0_0, %c0_1] : memref<11x8x128xf32, #tpu.memory_space<vmem>>, vector<1x8x128xf32>
    %1 = vector.shape_cast %0 : vector<1x8x128xf32> to vector<8x128xf32>
    %c1 = arith.constant 1 : index
    %c0_2 = arith.constant 0 : index
    %c0_3 = arith.constant 0 : index
    %2 = vector.load %arg1[%c1, %c0_2, %c0_3] : memref<11x8x128xf32, #tpu.memory_space<vmem>>, vector<1x8x128xf32>
    %3 = vector.shape_cast %2 : vector<1x8x128xf32> to vector<8x128xf32>
    %c2 = arith.constant 2 : index
    %c0_4 = arith.constant 0 : index
    %c0_5 = arith.constant 0 : index
    %4 = vector.load %arg1[%c2, %c0_4, %c0_5] : memref<11x8x128xf32, #tpu.memory_space<vmem>>, vector<1x8x128xf32>
    %5 = vector.shape_cast %4 : vector<1x8x128xf32> to vector<8x128xf32>
    %c3 = arith.constant 3 : index
    %c0_6 = arith.constant 0 : index
    %c0_7 = arith.constant 0 : index
    %6 = vector.load %arg1[%c3, %c0_6, %c0_7] : memref<11x8x128xf32, #tpu.memory_space<vmem>>, vector<1x8x128xf32>
    %7 = vector.shape_cast %6 : vector<1x8x128xf32> to vector<8x128xf32>
    %c4 = arith.constant 4 : index
    %c0_8 = arith.constant 0 : index
    %c0_9 = arith.constant 0 : index
    %8 = vector.load %arg1[%c4, %c0_8, %c0_9] : memref<11x8x128xf32, #tpu.memory_space<vmem>>, vector<1x8x128xf32>
    %9 = vector.shape_cast %8 : vector<1x8x128xf32> to vector<8x128xf32>
    %c5 = arith.constant 5 : index
    %c0_10 = arith.constant 0 : index
    %c0_11 = arith.constant 0 : index
    %10 = vector.load %arg1[%c5, %c0_10, %c0_11] : memref<11x8x128xf32, #tpu.memory_space<vmem>>, vector<1x8x128xf32>
    %11 = vector.shape_cast %10 : vector<1x8x128xf32> to vector<8x128xf32>
    %c6 = arith.constant 6 : index
    %c0_12 = arith.constant 0 : index
    %c0_13 = arith.constant 0 : index
    %12 = vector.load %arg1[%c6, %c0_12, %c0_13] : memref<11x8x128xf32, #tpu.memory_space<vmem>>, vector<1x8x128xf32>
    %13 = vector.shape_cast %12 : vector<1x8x128xf32> to vector<8x128xf32>
    %c7 = arith.constant 7 : index
    %c0_14 = arith.constant 0 : index
    %c0_15 = arith.constant 0 : index
    %14 = vector.load %arg1[%c7, %c0_14, %c0_15] : memref<11x8x128xf32, #tpu.memory_space<vmem>>, vector<1x8x128xf32>
    %15 = vector.shape_cast %14 : vector<1x8x128xf32> to vector<8x128xf32>
    %c8 = arith.constant 8 : index
    %c0_16 = arith.constant 0 : index
    %c0_17 = arith.constant 0 : index
    %16 = vector.load %arg1[%c8, %c0_16, %c0_17] : memref<11x8x128xf32, #tpu.memory_space<vmem>>, vector<1x8x128xf32>
    %17 = vector.shape_cast %16 : vector<1x8x128xf32> to vector<8x128xf32>
    %c9 = arith.constant 9 : index
    %c0_18 = arith.constant 0 : index
    %c0_19 = arith.constant 0 : index
    %18 = vector.load %arg1[%c9, %c0_18, %c0_19] : memref<11x8x128xf32, #tpu.memory_space<vmem>>, vector<1x8x128xf32>
    %19 = vector.shape_cast %18 : vector<1x8x128xf32> to vector<8x128xf32>
    %c10 = arith.constant 10 : index
    %c0_20 = arith.constant 0 : index
    %c0_21 = arith.constant 0 : index
    %20 = vector.load %arg1[%c10, %c0_20, %c0_21] : memref<11x8x128xf32, #tpu.memory_space<vmem>>, vector<1x8x128xf32>
    %21 = vector.shape_cast %20 : vector<1x8x128xf32> to vector<8x128xf32>
    %22 = arith.subf %1, %7 : vector<8x128xf32>
    %23 = arith.subf %3, %9 : vector<8x128xf32>
    %24 = arith.subf %5, %11 : vector<8x128xf32>
    %25 = arith.subf %13, %7 : vector<8x128xf32>
    %26 = arith.subf %15, %9 : vector<8x128xf32>
    %27 = arith.subf %17, %11 : vector<8x128xf32>
    %28 = arith.mulf %22, %25 : vector<8x128xf32>
    %29 = arith.mulf %23, %26 : vector<8x128xf32>
    %30 = arith.addf %28, %29 : vector<8x128xf32>
    %31 = arith.mulf %24, %27 : vector<8x128xf32>
    %32 = arith.addf %30, %31 : vector<8x128xf32>
    %33 = arith.mulf %23, %27 : vector<8x128xf32>
    %34 = arith.mulf %24, %26 : vector<8x128xf32>
    %35 = arith.subf %33, %34 : vector<8x128xf32>
    %36 = arith.mulf %24, %25 : vector<8x128xf32>
    %37 = arith.mulf %22, %27 : vector<8x128xf32>
    %38 = arith.subf %36, %37 : vector<8x128xf32>
    %39 = arith.mulf %22, %26 : vector<8x128xf32>
    %40 = arith.mulf %23, %25 : vector<8x128xf32>
    %41 = arith.subf %39, %40 : vector<8x128xf32>
    %42 = arith.mulf %35, %35 : vector<8x128xf32>
    %43 = arith.mulf %38, %38 : vector<8x128xf32>
    %44 = arith.addf %42, %43 : vector<8x128xf32>
    %45 = arith.mulf %41, %41 : vector<8x128xf32>
    %46 = arith.addf %44, %45 : vector<8x128xf32>
    %47 = math.sqrt %46 : vector<8x128xf32>
    %48 = math.atan2 %47, %32 : vector<8x128xf32>
    %49 = arith.subf %48, %19 : vector<8x128xf32>
    %cst = arith.constant 5.000000e-01 : f32
    %50 = vector.broadcast %cst : f32 to vector<8x128xf32>
    %51 = arith.mulf %50, %21 : vector<8x128xf32>
    %52 = arith.mulf %51, %49 : vector<8x128xf32>
    %53 = arith.mulf %52, %49 : vector<8x128xf32>
    %54 = vector.shape_cast %53 : vector<8x128xf32> to vector<1x8x128xf32>
    %cst_22 = arith.constant dense<0.000000e+00> : vector<8x128xf32>
    %55 = vector.multi_reduction <add>, %54, %cst_22 [0] : vector<1x8x128xf32> to vector<8x128xf32>
    %c0_23 = arith.constant 0 : index
    %c0_24 = arith.constant 0 : index
    %56 = vector.load %arg2[%c0_23, %c0_24] : memref<8x128xf32, #tpu.memory_space<vmem>>, vector<8x128xf32>
    tpu.vector_store %arg2[%c0_23, %c0_24], %55 {strides = array<i32>} : memref<8x128xf32, #tpu.memory_space<vmem>>, vector<8x128xf32>,
    return
  }
  func.func @transform_0(%arg0: i32) -> (i32, i32, i32) {
    %c0_i32 = arith.constant 0 : i32
    %c0_i32_0 = arith.constant 0 : i32
    %c0_i32_1 = arith.constant 0 : i32
    return %c0_i32, %arg0, %c0_i32_0 : i32, i32, i32
  }
  func.func @transform_1(%arg0: i32) -> (i32, i32) {
    %c0_i32 = arith.constant 0 : i32
    %c0_i32_0 = arith.constant 0 : i32
    return %arg0, %c0_i32 : i32, i32
  }
}

</mosaic_0001>

<llo_original>
// kernel: tpu_custom_call.1
$region0: #{tpu_custom_call.1}
  #allocation0 [shape = 'u32[]', space=smem, size = 0x4, offset = 0x4, fixed_abs, tag = 'smem constant byte address 0x4 - core index']
  #allocation1 [shape = 'u32[144,128]{1,0:T(1,128)}', space=vmem, size = 0x12000, scoped, tag = 'internal scratch']
  %s0 = inlined_call_operand.hbm [shape: f32[11,8,128], index: 0, kind: input, shape index: {}]
  %s1 = inlined_call_operand.hbm [shape: f32[8,128], index: 1, kind: output, shape index: {}]
  %s2 = sld [smem:[#allocation0]]
  $region18: #{tpu_custom_call.1} parent=0
    _
  %s4 = ssub.s32 1, %s2
  %s5 = scalar_select 0, %s4, %s2
  $region1: #{tpu_custom_call.1} parent=0
    #allocation2 [shape = 'u8[45056]{0}', space=vmem, size = 0xb000, scoped, tag = 'input window, operand 0, single buffered']
    #allocation3 [shape = 's32[1]{0}', space=sflag, size = 0x4, scoped, tag = 'scoped memory for tpu_custom_call.1']
    #allocation4 [shape = 's32[1]{0}', space=sflag, size = 0x4, scoped, tag = 'scoped memory for tpu_custom_call.1']
    #allocation5 [shape = 'u8[4096]{0}', space=vmem, size = 0x1000, scoped, tag = 'output window, operand 0, single buffered']
    %6 = vsyncpa [#allocation3], 0
    %7 = vsyncpa [#allocation4], 0
    // Predicated region
    $region2: #{tpu_custom_call.1} parent=1 // pred_check
      _
    $region3: #{tpu_custom_call.1} parent=1 // pred_check_branch
      %9 = sbr.rel (0) target = $region5
    $region4: #{tpu_custom_call.1} parent=1 // pred_region
      %s11 = ssub.s32 1408, 1408
      %12 = vsyncadd [#allocation3], %s11
      %s13 = sshll.u32 [#allocation2], 4
      %s14 = int_to_ptr.vmem [resolvable:$true] %s13
      %19 = dma.hbm_to_vmem [thread:$0]  %s0, 1408, %s14, [#allocation3], 128, 128, 8
    $region5: #{tpu_custom_call.1} parent=1 // pred_fallthru
      _
    // Predicated region
    $region6: #{tpu_custom_call.1} parent=1 // pred_check
      _
    $region7: #{tpu_custom_call.1} parent=1 // pred_check_branch
      %21 = sbr.rel (0) target = $region9
    $region8: #{tpu_custom_call.1} parent=1 // pred_region
      %22 = dma.done [#allocation3], 1408
    $region9: #{tpu_custom_call.1} parent=1 // pred_fallthru
      _
    %v23 = vld [vmem:[#allocation2] sm:$0xff]
    %s24 = scalar_lea.vmem [#allocation2], 8
    %v25 = vld [vmem:[%s24] sm:$0xff]
    %s26 = scalar_lea.vmem [#allocation2], 16
    %v27 = vld [vmem:[%s26] sm:$0xff]
    %s28 = scalar_lea.vmem [#allocation2], 24
    %v29 = vld [vmem:[%s28] sm:$0xff]
    %s30 = scalar_lea.vmem [#allocation2], 32
    %v31 = vld [vmem:[%s30] sm:$0xff]
    %s32 = scalar_lea.vmem [#allocation2], 40
    %v33 = vld [vmem:[%s32] sm:$0xff]
    %s34 = scalar_lea.vmem [#allocation2], 48
    %v35 = vld [vmem:[%s34] sm:$0xff]
    %s36 = scalar_lea.vmem [#allocation2], 56
    %v37 = vld [vmem:[%s36] sm:$0xff]
    %s38 = scalar_lea.vmem [#allocation2], 64
    %v39 = vld [vmem:[%s38] sm:$0xff]
    %s40 = scalar_lea.vmem [#allocation2], 72
    %v41 = vld [vmem:[%s40] sm:$0xff]
    %s42 = scalar_lea.vmem [#allocation2], 80
    %v43 = vld [vmem:[%s42] sm:$0xff]
    %v44 = vsub.f32 %v23, %v29
    %v45 = vsub.f32 %v25, %v31
    %v46 = vsub.f32 %v27, %v33
    %v47 = vsub.f32 %v35, %v29
    %v48 = vsub.f32 %v37, %v31
    %v49 = vsub.f32 %v39, %v33
    %v50 = vmul.f32 %v44, %v47
    %v51 = vmul.f32 %v45, %v48
    %v52 = vadd.f32 %v50, %v51
    %v53 = vmul.f32 %v46, %v49
    %v54 = vadd.f32 %v52, %v53
    %v55 = vmul.f32 %v45, %v49
    %v56 = vmul.f32 %v46, %v48
    %v57 = vsub.f32 %v55, %v56
    %v58 = vmul.f32 %v46, %v47
    %v59 = vmul.f32 %v44, %v49
    %v60 = vsub.f32 %v58, %v59
    %v61 = vmul.f32 %v44, %v48
    %v62 = vmul.f32 %v45, %v47
    %v63 = vsub.f32 %v61, %v62
    %v64 = vmul.f32 %v57, %v57
    %v65 = vmul.f32 %v60, %v60
    %v66 = vadd.f32 %v64, %v65
    %v67 = vmul.f32 %v63, %v63
    %v68 = vadd.f32 %v66, %v67
    %v69 = vrsqrt.pop %v68
    %v70 = vmul.f32 %v68, %v69
    %vm71 = vcmp.eq.f32.partialorder %v68, inf
    %v72 = vsel %vm71, %v68, %v70
    %vm73 = vcmp.eq.f32.partialorder %v68, 0.0
    %v74 = vand.u32 %v68, 2147483648
    %v75 = vsel %vm73, %v74, %v72
    %v76 = vand.u32 2147483647, %v54
    %v77 = vand.u32 2147483647, %v75
    %v78 = vmin.f32 %v76, %v77
    %v79 = vmax.f32 %v76, %v77
    %v80 = vrcp.pop %v79
    %v81 = vmul.f32 %v78, %v80
    %v82 = vmul.f32 %v81, %v81
    %v83 = vmul.f32 0.002785687, %v82
    %v84 = vadd.f32 %v83, -0.015866
    %v85 = vmul.f32 %v84, %v82
    %v86 = vadd.f32 %v85, 0.04247222
    %v87 = vmul.f32 %v86, %v82
    %v88 = vadd.f32 %v87, -0.074975304
    %v89 = vmul.f32 %v88, %v82
    %v90 = vadd.f32 %v89, 0.1064488
    %v91 = vmul.f32 %v90, %v82
    %v92 = vadd.f32 %v91, -0.14207031
    %v93 = vmul.f32 %v92, %v82
    %v94 = vadd.f32 %v93, 0.19993454
    %v95 = vmul.f32 %v94, %v82
    %v96 = vadd.f32 %v95, -0.33333147
    %v97 = vmul.f32 %v96, %v82
    %v98 = vmul.f32 %v97, %v81
    %v99 = vadd.f32 %v98, %v81
    %vm100 = vcmp.gt.f32.partialorder %v77, %v76
    %v101 = vsub.f32 1.5707964, %v99
    %v102 = vsel %vm100, %v101, %v99
    %vm103 = vcmp.lt.f32.partialorder %v54, 0.0
    %v104 = vsub.f32 3.1415927, %v102
    %v105 = vsel %vm103, %v104, %v102
    %vm106 = vcmp.lt.s32.totalorder %v54, 0
    %v107 = vsel %vm106, 3.1415927, 0.0
    %vm108 = vcmp.eq.f32.partialorder %v75, 0.0
    %v109 = vsel %vm108, %v107, %v105
    %vm110 = vcmp.ne.f32.partialorder %v54, %v54
    %vm111 = vcmp.ne.f32.partialorder %v75, %v75
    %vm112 = vmor %vm110, %vm111
    %v113 = vsel %vm112, nan, %v109
    %vm114 = vcmp.lt.f32.partialorder %v54, 0.0
    %v115 = vsel %vm114, 2.3561945, 0.7853982
    %vm116 = vcmp.eq.s32.totalorder %v76, inf
    %vm117 = vcmp.eq.s32.totalorder %v77, inf
    %vm118 = vmand %vm116, %vm117
    %v119 = vsel %vm118, %v115, %v113
    %v120 = vand.u32 2147483647, %v119
    %v121 = vand.u32 %v75, 2147483648
    %v122 = vor.u32 %v120, %v121
    %v123 = vsub.f32 %v122, %v41
    %v124 = vmul.f32 %v43, 0.5
    %v125 = vmul.f32 %v124, %v123
    %v126 = vmul.f32 %v125, %v123
    %v127 = vadd.f32 %v126, 0.0
    %128 = vst [vmem:[#allocation5] sm:$0xff] %v127
    // Predicated region
    $region10: #{tpu_custom_call.1} parent=1 // pred_check
      _
    $region11: #{tpu_custom_call.1} parent=1 // pred_check_branch
      %130 = sbr.rel (0) target = $region13
    $region12: #{tpu_custom_call.1} parent=1 // pred_region
      %s132 = ssub.s32 128, 128
      %133 = vsyncadd [#allocation4], %s132
      %s135 = sshll.u32 [#allocation5], 4
      %s136 = int_to_ptr.vmem [resolvable:$true] %s135
      %138 = dma.vmem_to_hbm [thread:$0]  %s136, 128, %s1, [#allocation4]
    $region13: #{tpu_custom_call.1} parent=1 // pred_fallthru
      _
    // Predicated region
    $region14: #{tpu_custom_call.1} parent=1 // pred_check
      _
    $region15: #{tpu_custom_call.1} parent=1 // pred_check_branch
      %140 = sbr.rel (0) target = $region17
    $region16: #{tpu_custom_call.1} parent=1 // pred_region
      %141 = dma.done [#allocation4], 128
    $region17: #{tpu_custom_call.1} parent=1 // pred_fallthru
      _
    %142 = vsyncpa [#allocation3], 1
    %143 = vsyncpa [#allocation4], 1

</llo_original>
